<compile_context>
chip_gen: v7x
topology: tpu7x:2x2x1
jax: 0.10.0
libtpu: 0.0.40
codegen_flags: <defaults>
</compile_context>

<pallas_src>
import functools

import jax
import jax.numpy as jnp
from jax.experimental import pallas as pl
from jax.experimental.pallas import tpu as pltpu


def mouse_kernel(x_ref, w1_ref, b1_ref, w2_ref, b2_ref, out_ref, *, N, L, K1, K2):
    """Single invocation over the full batch (no grid).

    x_ref  : (N, C_in, L)   input, PyTorch NCL layout (L on the lane axis)
    w1_ref : (F1, K1*C_in)  im2col-packed conv1 weight
    b1_ref : (F1, 1)
    w2_ref : (F2, K2*F1)    im2col-packed conv2 weight
    b2_ref : (F2, 1)
    out_ref: (N, L)
    """
    C_in = x_ref.shape[1]
    F1 = w1_ref.shape[0]
    pad1 = (K1 - 1) // 2
    pad2 = (K2 - 1) // 2

    x = x_ref[...]      # (N, C_in, L)
    w1 = w1_ref[...]    # (F1, K1*C_in)
    b1 = b1_ref[...]    # (F1, 1)
    w2 = w2_ref[...]    # (F2, K2*F1)
    b2 = b2_ref[...]    # (F2, 1)

    zpad1 = jnp.zeros((C_in, pad1), jnp.float32)
    zpad2 = jnp.zeros((F1, pad2), jnp.float32)

    rows = []
    for n in range(N):  # static unroll; N is tiny
        xn = x[n]                                                        # (C_in, L)
        # "same" padding (odd K) applied to the value, in registers.
        xp = jnp.concatenate([zpad1, xn, zpad1], axis=-1) if pad1 else xn  # (C_in, L+2*pad1)
        # im2col over taps stacked on the sublane axis -> one matmul for conv1.
        cols1 = jnp.concatenate([xp[:, k:k + L] for k in range(K1)], axis=0)  # (K1*C_in, L)
        h1 = jnp.dot(w1, cols1, preferred_element_type=jnp.float32) + b1      # (F1, L)

        h1p = jnp.concatenate([zpad2, h1, zpad2], axis=-1) if pad2 else h1    # (F1, L+2*pad2)
        cols2 = jnp.concatenate([h1p[:, k:k + L] for k in range(K2)], axis=0)  # (K2*F1, L)
        h2 = jnp.dot(w2, cols2, preferred_element_type=jnp.float32) + b2       # (F2, L)

        m = jnp.max(h2, axis=0, keepdims=True)                           # (1, L)
        rows.append(jax.nn.sigmoid(m))

    # Single full-block, lane-dense store of the whole batch.
    out_ref[...] = jnp.concatenate(rows, axis=0) if N > 1 else rows[0]


def mouse_model_forward(x_ncl, w1, b1, w2, b2):
    """x_ncl: (N, C_in, L) like the PyTorch module input.

    w1: (F1, C_in, K1), b1: (F1,)   -- PyTorch Conv1d weight layout
    w2: (F2, F1, K2),   b2: (F2,)
    Returns (N, L) = sigmoid(max_over_channels(conv2(conv1(x)))).
    """
    N, C_in, L = x_ncl.shape
    F1, _, K1 = w1.shape
    F2, _, K2 = w2.shape
    # PyTorch's padding=(K-1)//2 is "same" only for odd kernel widths.
    assert K1 % 2 == 1 and K2 % 2 == 1, "filter widths must be odd for 'same' padding"

    # Tiny one-time weight prepack in the wrapper (no per-sample HBM passes;
    # x is passed through untouched in its native NCL layout).
    x_f32 = x_ncl.astype(jnp.float32)                                        # (N, C_in, L)
    w1_flat = jnp.transpose(w1, (0, 2, 1)).reshape(F1, K1 * C_in).astype(jnp.float32)
    w2_flat = jnp.transpose(w2, (0, 2, 1)).reshape(F2, K2 * F1).astype(jnp.float32)
    b1_2d = b1.reshape(F1, 1).astype(jnp.float32)
    b2_2d = b2.reshape(F2, 1).astype(jnp.float32)

    kernel = functools.partial(mouse_kernel, N=N, L=L, K1=K1, K2=K2)

    return pl.pallas_call(
        kernel,
        out_shape=jax.ShapeDtypeStruct((N, L), jnp.float32),
        in_specs=[pl.BlockSpec(memory_space=pltpu.MemorySpace.VMEM) for _ in range(5)],
        out_specs=pl.BlockSpec(memory_space=pltpu.MemorySpace.VMEM),
    )(x_f32, w1_flat, b1_2d, w2_flat, b2_2d)


def _reference_forward(x_ncl, w1, b1, w2, b2):
    """Pure-JAX reference mirroring the PyTorch module, for validation."""
    K1 = w1.shape[2]
    K2 = w2.shape[2]
    dn = jax.lax.conv_dimension_numbers(x_ncl.shape, w1.shape, ("NCH", "OIH", "NCH"))
    h1 = jax.lax.conv_general_dilated(
        x_ncl, w1, window_strides=(1,),
        padding=[((K1 - 1) // 2, (K1 - 1) // 2)], dimension_numbers=dn)
    h1 = h1 + b1[None, :, None]
    dn2 = jax.lax.conv_dimension_numbers(h1.shape, w2.shape, ("NCH", "OIH", "NCH"))
    h2 = jax.lax.conv_general_dilated(
        h1, w2, window_strides=(1,),
        padding=[((K2 - 1) // 2, (K2 - 1) // 2)], dimension_numbers=dn2)
    h2 = h2 + b2[None, :, None]
    return jax.nn.sigmoid(jnp.max(h2, axis=1))


if __name__ == "__main__":
    # Small shapes implied by the module (MouseParams-ish config).
    N = 2            # batch
    C_in = 4         # params.in_channels
    L = 16           # sequence length
    F1 = 8           # params.num_filters
    K1 = 3           # params.filter_width (odd -> "same")
    F2 = 8           # params.num_filters2
    K2 = 5           # params.filter_width2 (odd -> "same")

    key = jax.random.PRNGKey(0)
    kx, kw1, kb1, kw2, kb2 = jax.random.split(key, 5)
    x = jax.random.normal(kx, (N, C_in, L), dtype=jnp.float32)
    w1 = 0.2 * jax.random.normal(kw1, (F1, C_in, K1), dtype=jnp.float32)
    b1 = 0.1 * jax.random.normal(kb1, (F1,), dtype=jnp.float32)
    w2 = 0.2 * jax.random.normal(kw2, (F2, F1, K2), dtype=jnp.float32)
    b2 = 0.1 * jax.random.normal(kb2, (F2,), dtype=jnp.float32)

    out = mouse_model_forward(x, w1, b1, w2, b2)
    out = jax.block_until_ready(out)

    ref = jax.block_until_ready(_reference_forward(x, w1, b1, w2, b2))
    assert out.shape == (N, L), out.shape
    assert jnp.allclose(out, ref, atol=1e-5, rtol=1e-5), (
        float(jnp.max(jnp.abs(out - ref))))

    print("KERNEL_OK")
</pallas_src>

<mosaic_0001>
module attributes {stable_mosaic.version = 11 : i64} {
  func.func @mouse_kernel(%arg0: memref<2x4x16xf32, #tpu.memory_space<vmem>>, %arg1: memref<8x12xf32, #tpu.memory_space<vmem>>, %arg2: memref<8x1xf32, #tpu.memory_space<vmem>>, %arg3: memref<8x40xf32, #tpu.memory_space<vmem>>, %arg4: memref<8x1xf32, #tpu.memory_space<vmem>>, %arg5: memref<2x16xf32, #tpu.memory_space<vmem>>) attributes {dimension_semantics = [], scalar_prefetch = 0 : i64, scratch_operands = 0 : i64, tpu.core_type = #tpu.core_type<tc>} {
    %c0 = arith.constant 0 : index
    %c0_0 = arith.constant 0 : index
    %c0_1 = arith.constant 0 : index
    %0 = vector.load %arg0[%c0, %c0_0, %c0_1] : memref<2x4x16xf32, #tpu.memory_space<vmem>>, vector<2x4x16xf32>
    %c0_2 = arith.constant 0 : index
    %c0_3 = arith.constant 0 : index
    %1 = vector.load %arg1[%c0_2, %c0_3] : memref<8x12xf32, #tpu.memory_space<vmem>>, vector<8x12xf32>
    %c0_4 = arith.constant 0 : index
    %c0_5 = arith.constant 0 : index
    %2 = vector.load %arg2[%c0_4, %c0_5] : memref<8x1xf32, #tpu.memory_space<vmem>>, vector<8x1xf32>
    %c0_6 = arith.constant 0 : index
    %c0_7 = arith.constant 0 : index
    %3 = vector.load %arg3[%c0_6, %c0_7] : memref<8x40xf32, #tpu.memory_space<vmem>>, vector<8x40xf32>
    %c0_8 = arith.constant 0 : index
    %c0_9 = arith.constant 0 : index
    %4 = vector.load %arg4[%c0_8, %c0_9] : memref<8x1xf32, #tpu.memory_space<vmem>>, vector<8x1xf32>
    %cst = arith.constant 0.000000e+00 : f32
    %5 = vector.broadcast %cst : f32 to vector<4x1xf32>
    %cst_10 = arith.constant 0.000000e+00 : f32
    %6 = vector.broadcast %cst_10 : f32 to vector<8x2xf32>
    %7 = vector.extract_strided_slice %0 {offsets = [0, 0, 0], sizes = [1, 4, 16], strides = [1, 1, 1]} : vector<2x4x16xf32> to vector<1x4x16xf32>
    %8 = vector.shape_cast %7 : vector<1x4x16xf32> to vector<4x16xf32>
    %9 = tpu.concatenate %5, %8, %5 in 1 : vector<4x1xf32>, vector<4x16xf32>, vector<4x1xf32> -> vector<4x18xf32>
    %10 = vector.extract_strided_slice %9 {offsets = [0, 0], sizes = [4, 16], strides = [1, 1]} : vector<4x18xf32> to vector<4x16xf32>
    %11 = vector.extract_strided_slice %9 {offsets = [0, 1], sizes = [4, 16], strides = [1, 1]} : vector<4x18xf32> to vector<4x16xf32>
    %12 = vector.extract_strided_slice %9 {offsets = [0, 2], sizes = [4, 16], strides = [1, 1]} : vector<4x18xf32> to vector<4x16xf32>
    %13 = tpu.concatenate %10, %11, %12 in 0 : vector<4x16xf32>, vector<4x16xf32>, vector<4x16xf32> -> vector<12x16xf32>
    %cst_11 = arith.constant dense<0.000000e+00> : vector<8x16xf32>
    %14 = tpu.matmul %1, %13, %cst_11 {dimension_numbers = #tpu.dot_dimension_numbers<[1], [0], [0], [1], [0, 0, 1, 1], [], []>} : vector<8x12xf32>, vector<12x16xf32>, vector<8x16xf32> -> vector<8x16xf32>
    %15 = vector.broadcast %2 : vector<8x1xf32> to vector<8x16xf32>
    %16 = arith.addf %14, %15 : vector<8x16xf32>
    %17 = tpu.concatenate %6, %16, %6 in 1 : vector<8x2xf32>, vector<8x16xf32>, vector<8x2xf32> -> vector<8x20xf32>
    %18 = vector.extract_strided_slice %17 {offsets = [0, 0], sizes = [8, 16], strides = [1, 1]} : vector<8x20xf32> to vector<8x16xf32>
    %19 = vector.extract_strided_slice %17 {offsets = [0, 1], sizes = [8, 16], strides = [1, 1]} : vector<8x20xf32> to vector<8x16xf32>
    %20 = vector.extract_strided_slice %17 {offsets = [0, 2], sizes = [8, 16], strides = [1, 1]} : vector<8x20xf32> to vector<8x16xf32>
    %21 = vector.extract_strided_slice %17 {offsets = [0, 3], sizes = [8, 16], strides = [1, 1]} : vector<8x20xf32> to vector<8x16xf32>
    %22 = vector.extract_strided_slice %17 {offsets = [0, 4], sizes = [8, 16], strides = [1, 1]} : vector<8x20xf32> to vector<8x16xf32>
    %23 = tpu.concatenate %18, %19, %20, %21, %22 in 0 : vector<8x16xf32>, vector<8x16xf32>, vector<8x16xf32>, vector<8x16xf32>, vector<8x16xf32> -> vector<40x16xf32>
    %cst_12 = arith.constant dense<0.000000e+00> : vector<8x16xf32>
    %24 = tpu.matmul %3, %23, %cst_12 {dimension_numbers = #tpu.dot_dimension_numbers<[1], [0], [0], [1], [0, 0, 1, 1], [], []>} : vector<8x40xf32>, vector<40x16xf32>, vector<8x16xf32> -> vector<8x16xf32>
    %25 = vector.broadcast %4 : vector<8x1xf32> to vector<8x16xf32>
    %26 = arith.addf %24, %25 : vector<8x16xf32>
    %cst_13 = arith.constant dense<0xFF800000> : vector<16xf32>
    %27 = vector.multi_reduction <maximumf>, %26, %cst_13 [0] : vector<8x16xf32> to vector<16xf32>
    %28 = vector.shape_cast %27 : vector<16xf32> to vector<1x16xf32>
    %29 = arith.negf %28 : vector<1x16xf32>
    %30 = math.exp %29 : vector<1x16xf32>
    %cst_14 = arith.constant 1.000000e+00 : f32
    %31 = vector.broadcast %cst_14 : f32 to vector<1x16xf32>
    %32 = arith.addf %31, %30 : vector<1x16xf32>
    %33 = arith.divf %31, %32 : vector<1x16xf32>
    %34 = vector.extract_strided_slice %0 {offsets = [1, 0, 0], sizes = [1, 4, 16], strides = [1, 1, 1]} : vector<2x4x16xf32> to vector<1x4x16xf32>
    %35 = vector.shape_cast %34 : vector<1x4x16xf32> to vector<4x16xf32>
    %36 = tpu.concatenate %5, %35, %5 in 1 : vector<4x1xf32>, vector<4x16xf32>, vector<4x1xf32> -> vector<4x18xf32>
    %37 = vector.extract_strided_slice %36 {offsets = [0, 0], sizes = [4, 16], strides = [1, 1]} : vector<4x18xf32> to vector<4x16xf32>
    %38 = vector.extract_strided_slice %36 {offsets = [0, 1], sizes = [4, 16], strides = [1, 1]} : vector<4x18xf32> to vector<4x16xf32>
    %39 = vector.extract_strided_slice %36 {offsets = [0, 2], sizes = [4, 16], strides = [1, 1]} : vector<4x18xf32> to vector<4x16xf32>
    %40 = tpu.concatenate %37, %38, %39 in 0 : vector<4x16xf32>, vector<4x16xf32>, vector<4x16xf32> -> vector<12x16xf32>
    %cst_15 = arith.constant dense<0.000000e+00> : vector<8x16xf32>
    %41 = tpu.matmul %1, %40, %cst_15 {dimension_numbers = #tpu.dot_dimension_numbers<[1], [0], [0], [1], [0, 0, 1, 1], [], []>} : vector<8x12xf32>, vector<12x16xf32>, vector<8x16xf32> -> vector<8x16xf32>
    %42 = vector.broadcast %2 : vector<8x1xf32> to vector<8x16xf32>
    %43 = arith.addf %41, %42 : vector<8x16xf32>
    %44 = tpu.concatenate %6, %43, %6 in 1 : vector<8x2xf32>, vector<8x16xf32>, vector<8x2xf32> -> vector<8x20xf32>
    %45 = vector.extract_strided_slice %44 {offsets = [0, 0], sizes = [8, 16], strides = [1, 1]} : vector<8x20xf32> to vector<8x16xf32>
    %46 = vector.extract_strided_slice %44 {offsets = [0, 1], sizes = [8, 16], strides = [1, 1]} : vector<8x20xf32> to vector<8x16xf32>
    %47 = vector.extract_strided_slice %44 {offsets = [0, 2], sizes = [8, 16], strides = [1, 1]} : vector<8x20xf32> to vector<8x16xf32>
    %48 = vector.extract_strided_slice %44 {offsets = [0, 3], sizes = [8, 16], strides = [1, 1]} : vector<8x20xf32> to vector<8x16xf32>
    %49 = vector.extract_strided_slice %44 {offsets = [0, 4], sizes = [8, 16], strides = [1, 1]} : vector<8x20xf32> to vector<8x16xf32>
    %50 = tpu.concatenate %45, %46, %47, %48, %49 in 0 : vector<8x16xf32>, vector<8x16xf32>, vector<8x16xf32>, vector<8x16xf32>, vector<8x16xf32> -> vector<40x16xf32>
    %cst_16 = arith.constant dense<0.000000e+00> : vector<8x16xf32>
    %51 = tpu.matmul %3, %50, %cst_16 {dimension_numbers = #tpu.dot_dimension_numbers<[1], [0], [0], [1], [0, 0, 1, 1], [], []>} : vector<8x40xf32>, vector<40x16xf32>, vector<8x16xf32> -> vector<8x16xf32>
    %52 = vector.broadcast %4 : vector<8x1xf32> to vector<8x16xf32>
    %53 = arith.addf %51, %52 : vector<8x16xf32>
    %cst_17 = arith.constant dense<0xFF800000> : vector<16xf32>
    %54 = vector.multi_reduction <maximumf>, %53, %cst_17 [0] : vector<8x16xf32> to vector<16xf32>
    %55 = vector.shape_cast %54 : vector<16xf32> to vector<1x16xf32>
    %56 = arith.negf %55 : vector<1x16xf32>
    %57 = math.exp %56 : vector<1x16xf32>
    %cst_18 = arith.constant 1.000000e+00 : f32
    %58 = vector.broadcast %cst_18 : f32 to vector<1x16xf32>
    %59 = arith.addf %58, %57 : vector<1x16xf32>
    %60 = arith.divf %58, %59 : vector<1x16xf32>
    %61 = tpu.concatenate %33, %60 in 0 : vector<1x16xf32>, vector<1x16xf32> -> vector<2x16xf32>
    %c0_19 = arith.constant 0 : index
    %c0_20 = arith.constant 0 : index
    %62 = vector.load %arg5[%c0_19, %c0_20] : memref<2x16xf32, #tpu.memory_space<vmem>>, vector<2x16xf32>
    tpu.vector_store %arg5[%c0_19, %c0_20], %61 {strides = array<i32>} : memref<2x16xf32, #tpu.memory_space<vmem>>, vector<2x16xf32>,
    return
  }
}

</mosaic_0001>

<llo_original>
// kernel: tpu_custom_call.1
$region0: #{tpu_custom_call.1}
  #allocation0 [shape = 'u32[]', space=smem, size = 0x4, offset = 0x4, fixed_abs, tag = 'smem constant byte address 0x4 - core index']
  #allocation1 [shape = 'u32[144,128]{1,0:T(1,128)}', space=vmem, size = 0x12000, scoped, tag = 'internal scratch']
  %s0 = inlined_call_operand.vmem [shape: f32[2,4,16], index: 0, kind: input, shape index: {}]
  %s1 = inlined_call_operand.vmem [shape: f32[8,12], index: 1, kind: input, shape index: {}]
  %s2 = inlined_call_operand.vmem [shape: f32[8,1], index: 2, kind: input, shape index: {}]
  %s3 = inlined_call_operand.vmem [shape: f32[8,40], index: 3, kind: input, shape index: {}]
  %s4 = inlined_call_operand.vmem [shape: f32[8,1], index: 4, kind: input, shape index: {}]
  %s5 = inlined_call_operand.hbm [shape: f32[2,16], index: 5, kind: output, shape index: {}]
  %s6 = sld [smem:[#allocation0]]
  $region30: #{tpu_custom_call.1} parent=0
    _
  %s8 = ssub.s32 1, %s6
  %s9 = scalar_select 0, %s8, %s6
  $region1: #{tpu_custom_call.1} parent=0
    #allocation2 [shape = 'u8[1024]{0}', space=vmem, size = 0x400, scoped, tag = 'output window, operand 0, single buffered']
    #allocation3 [shape = 's32[1]{0}', space=sflag, size = 0x4, scoped, tag = 'scoped memory for tpu_custom_call.1']
    %10 = vsyncpa [#allocation3], 0
    // Predicated region
    $region2: #{tpu_custom_call.1} parent=1 // pred_check
      _
    $region3: #{tpu_custom_call.1} parent=1 // pred_check_branch
      %12 = sbr.rel (0) target = $region5
    $region4: #{tpu_custom_call.1} parent=1 // pred_region
      _
    $region5: #{tpu_custom_call.1} parent=1 // pred_fallthru
      _
    // Predicated region
    $region6: #{tpu_custom_call.1} parent=1 // pred_check
      _
    $region7: #{tpu_custom_call.1} parent=1 // pred_check_branch
      %14 = sbr.rel (0) target = $region9
    $region8: #{tpu_custom_call.1} parent=1 // pred_region
      _
    $region9: #{tpu_custom_call.1} parent=1 // pred_fallthru
      _
    // Predicated region
    $region10: #{tpu_custom_call.1} parent=1 // pred_check
      _
    $region11: #{tpu_custom_call.1} parent=1 // pred_check_branch
      %16 = sbr.rel (0) target = $region13
    $region12: #{tpu_custom_call.1} parent=1 // pred_region
      _
    $region13: #{tpu_custom_call.1} parent=1 // pred_fallthru
      _
    // Predicated region
    $region14: #{tpu_custom_call.1} parent=1 // pred_check
      _
    $region15: #{tpu_custom_call.1} parent=1 // pred_check_branch
      %18 = sbr.rel (0) target = $region17
    $region16: #{tpu_custom_call.1} parent=1 // pred_region
      _
    $region17: #{tpu_custom_call.1} parent=1 // pred_fallthru
      _
    // Predicated region
    $region18: #{tpu_custom_call.1} parent=1 // pred_check
      _
    $region19: #{tpu_custom_call.1} parent=1 // pred_check_branch
      %20 = sbr.rel (0) target = $region21
    $region20: #{tpu_custom_call.1} parent=1 // pred_region
      _
    $region21: #{tpu_custom_call.1} parent=1 // pred_fallthru
      _
    %v21 = vld [vmem:[%s0] sm:$0xf]
    %v22 = vld [vmem:[%s0 + $0x4] sm:$0xf]
    %v23 = vld [vmem:[%s1] sm:$0xff]
    %v24 = vld [vmem:[%s2] sm:$0xff]
    %v25 = vld [vmem:[%s3] sm:$0xff]
    %v26 = vld [vmem:[%s4] sm:$0xff]
    %28 = vrot.lane.b32.xlu0 %v21, 1
    %v29 = vpop.permute.xlu0 %28
    %vm31 = vcmask 7168
    %v32 = vsel %vm31, 0.0, %v29
    %vm33 = vcmask 138240
    %v34 = vsel %vm33, %v32, 0.0
    %v36 = vrot.slane %v34, 4
    %37 = vrot.lane.b32.xlu0 %v36, 127
    %v38 = vpop.permute.xlu0 %37
    %40 = vrot.lane.b32.xlu0 %v34, 126
    %v41 = vpop.permute.xlu0 %40
    %vm42 = vcmask 1043456
    %v43 = vsel %vm42, %v34, %v38
    %45 = vset.pattern.permute.xlu0 0
    %46 = vperm.xlu0 %45, %v24
    %v47 = vpop.permute.xlu0 %46
    %vm49 = vcmask 97280
    %v51 = vsel %vm49, %v23, 0
    %v53 = vsel %vm42, %v41, 0
    %55 = vmatprep.subr.mxu0 0.0
    %56 = vmatpush1.msra.mxu0 %v43
    %57 = vmatprep.subr.mxu0 0.0
    %58 = vmatpush1.msra.mxu0 %v53
    %59 = vmatprep.subr.mxu0 0.0
    %60 = vmatpush1.msra.mxu0 0.0
    %61 = vmatprep.subr.mxu0 0.0
    %62 = vmatpush1.msra.mxu0 0.0
    %63 = vmatprep.subr.mxu0 0.0
    %64 = vmatpush1.msra.mxu0 0.0
    %65 = vmatprep.subr.mxu0 0.0
    %66 = vmatpush1.msra.mxu0 0.0
    %67 = vmatprep.subr.mxu0 0.0
    %68 = vmatpush1.msra.mxu0 0.0
    %69 = vmatprep.subr.mxu0 0.0
    %70 = vmatpush1.msra.mxu0 0.0
    %71 = vmatprep.subr.mxu0 0.0
    %72 = vmatpush1.msra.mxu0 0.0
    %73 = vmatprep.subr.mxu0 0.0
    %74 = vmatpush1.msra.mxu0 0.0
    %75 = vmatprep.subr.mxu0 0.0
    %76 = vmatpush1.msra.mxu0 0.0
    %77 = vmatprep.subr.mxu0 0.0
    %78 = vmatpush1.msra.mxu0 0.0
    %79 = vmatprep.subr.mxu0 0.0
    %80 = vmatpush1.msra.mxu0 0.0
    %81 = vmatprep.subr.mxu0 0.0
    %82 = vmatpush1.msra.mxu0 0.0
    %83 = vmatprep.subr.mxu0 0.0
    %84 = vmatpush1.msra.mxu0 0.0
    %85 = vmatprep.subr.mxu0 0.0
    %86 = vmatpush1.msra.mxu0 0.0
    %87 = vmatprep.subr.mxu0 0.0
    %88 = vmatpush1.msra.mxu0 0.0
    %89 = vmatprep.subr.mxu0 0.0
    %90 = vmatpush1.msra.mxu0 0.0
    %91 = vmatprep.subr.mxu0 0.0
    %92 = vmatpush1.msra.mxu0 0.0
    %93 = vmatprep.subr.mxu0 0.0
    %94 = vmatpush1.msra.mxu0 0.0
    %95 = vmatprep.subr.mxu0 0.0
    %96 = vmatpush1.msra.mxu0 0.0
    %97 = vmatprep.subr.mxu0 0.0
    %98 = vmatpush1.msra.mxu0 0.0
    %99 = vmatprep.subr.mxu0 0.0
    %100 = vmatpush1.msra.mxu0 0.0
    %101 = vmatprep.subr.mxu0 0.0
    %102 = vmatpush1.msra.mxu0 0.0
    %103 = vmatprep.subr.mxu0 0.0
    %104 = vmatpush1.msra.mxu0 0.0
    %105 = vmatprep.subr.mxu0 0.0
    %106 = vmatpush1.msra.mxu0 0.0
    %107 = vmatprep.subr.mxu0 0.0
    %108 = vmatpush1.msra.mxu0 0.0
    %109 = vmatprep.subr.mxu0 0.0
    %110 = vmatpush1.msra.mxu0 0.0
    %111 = vmatprep.subr.mxu0 0.0
    %112 = vmatpush1.msra.mxu0 0.0
    %113 = vmatprep.subr.mxu0 0.0
    %114 = vmatpush1.msra.mxu0 0.0
    %115 = vmatprep.subr.mxu0 0.0
    %116 = vmatpush1.msra.mxu0 0.0
    %117 = vmatprep.subr.mxu0 0.0
    %118 = vmatpush1.msra.mxu0 0.0
    %119 = vmatprep.mubr.f32.mxu0 0.0
    %120 = vmatmul.mubr.f32.gmra.mrb[0].mxu0 %v51
    %v121 = vpop.f32.mrb[0].mxu0
    %v122 = vadd.f32 %v47, %v121
    %v123 = vpop.f32.mrb[0].mxu0
    %124 = vdwg.mxu0
    %126 = vrot.lane.b32.xlu0 %v122, 2
    %v127 = vpop.permute.xlu0 %126
    %vm129 = vcmask 15360
    %v130 = vsel %vm129, 0.0, %v127
    %vm131 = vcmask 146432
    %v132 = vsel %vm131, %v130, 0.0
    %134 = vrot.lane.b32.xlu0 %v132, 127
    %v135 = vpop.permute.xlu0 %134
    %137 = vrot.lane.b32.xlu0 %v132, 126
    %v138 = vpop.permute.xlu0 %137
    %140 = vrot.lane.b32.xlu0 %v132, 125
    %v141 = vpop.permute.xlu0 %140
    %143 = vrot.lane.b32.xlu0 %v132, 124
    %v144 = vpop.permute.xlu0 %143
    %147 = vset.pattern.permute.xlu0 0
    %148 = vperm.xlu0 %147, %v26
    %v149 = vpop.permute.xlu0 %148
    %vm151 = vcmask 326656
    %v153 = vsel %vm151, %v25, 0
    %155 = vmatprep.subr.mxu0 0.0
    %156 = vmatpush1.msra.mxu0 %v132
    %157 = vmatprep.subr.mxu0 0.0
    %158 = vmatpush1.msra.mxu0 %v135
    %159 = vmatprep.subr.mxu0 0.0
    %160 = vmatpush1.msra.mxu0 %v138
    %161 = vmatprep.subr.mxu0 0.0
    %162 = vmatpush1.msra.mxu0 %v141
    %163 = vmatprep.subr.mxu0 0.0
    %164 = vmatpush1.msra.mxu0 %v144
    %165 = vmatprep.subr.mxu0 0.0
    %166 = vmatpush1.msra.mxu0 0.0
    %167 = vmatprep.subr.mxu0 0.0
    %168 = vmatpush1.msra.mxu0 0.0
    %169 = vmatprep.subr.mxu0 0.0
    %170 = vmatpush1.msra.mxu0 0.0
    %171 = vmatprep.subr.mxu0 0.0
    %172 = vmatpush1.msra.mxu0 0.0
    %173 = vmatprep.subr.mxu0 0.0
    %174 = vmatpush1.msra.mxu0 0.0
    %175 = vmatprep.subr.mxu0 0.0
    %176 = vmatpush1.msra.mxu0 0.0
    %177 = vmatprep.subr.mxu0 0.0
    %178 = vmatpush1.msra.mxu0 0.0
    %179 = vmatprep.subr.mxu0 0.0
    %180 = vmatpush1.msra.mxu0 0.0
    %181 = vmatprep.subr.mxu0 0.0
    %182 = vmatpush1.msra.mxu0 0.0
    %183 = vmatprep.subr.mxu0 0.0
    %184 = vmatpush1.msra.mxu0 0.0
    %185 = vmatprep.subr.mxu0 0.0
    %186 = vmatpush1.msra.mxu0 0.0
    %187 = vmatprep.subr.mxu0 0.0
    %188 = vmatpush1.msra.mxu0 0.0
    %189 = vmatprep.subr.mxu0 0.0
    %190 = vmatpush1.msra.mxu0 0.0
    %191 = vmatprep.subr.mxu0 0.0
    %192 = vmatpush1.msra.mxu0 0.0
    %193 = vmatprep.subr.mxu0 0.0
    %194 = vmatpush1.msra.mxu0 0.0
    %195 = vmatprep.subr.mxu0 0.0
    %196 = vmatpush1.msra.mxu0 0.0
    %197 = vmatprep.subr.mxu0 0.0
    %198 = vmatpush1.msra.mxu0 0.0
    %199 = vmatprep.subr.mxu0 0.0
    %200 = vmatpush1.msra.mxu0 0.0
    %201 = vmatprep.subr.mxu0 0.0
    %202 = vmatpush1.msra.mxu0 0.0
    %203 = vmatprep.subr.mxu0 0.0
    %204 = vmatpush1.msra.mxu0 0.0
    %205 = vmatprep.subr.mxu0 0.0
    %206 = vmatpush1.msra.mxu0 0.0
    %207 = vmatprep.subr.mxu0 0.0
    %208 = vmatpush1.msra.mxu0 0.0
    %209 = vmatprep.subr.mxu0 0.0
    %210 = vmatpush1.msra.mxu0 0.0
    %211 = vmatprep.subr.mxu0 0.0
    %212 = vmatpush1.msra.mxu0 0.0
    %213 = vmatprep.subr.mxu0 0.0
    %214 = vmatpush1.msra.mxu0 0.0
    %215 = vmatprep.subr.mxu0 0.0
    %216 = vmatpush1.msra.mxu0 0.0
    %217 = vmatprep.subr.mxu0 0.0
    %218 = vmatpush1.msra.mxu0 0.0
    %219 = vmatprep.mubr.f32.mxu0 0.0
    %220 = vmatmul.mubr.f32.gmra.mrb[0].mxu0 %v153
    %v221 = vpop.f32.mrb[0].mxu0
    %v222 = vadd.f32 %v149, %v221
    %v223 = vpop.f32.mrb[0].mxu0
    %224 = vdwg.mxu0
    %vm225 = vcmask 130048
    %v226 = vsel %vm225, %v222, -inf
    %v227 = vrot.slane %v226, 4
    %v228 = vmax.f32 %v226, %v227
    %v229 = vrot.slane %v228, 2
    %v230 = vmax.f32 %v228, %v229
    %v231 = vrot.slane %v230, 1
    %v232 = vmax.f32 %v230, %v231
    %v233 = vxor.u32 %v232, 2147483648
    %v234 = vmul.f32 %v233, 1.442695
    %v235 = vpow.pop %v234
    %v236 = vadd.f32 %v235, 1.0
    %v237 = vrcp.pop %v236
    %v238 = vmul.f32 1.0, %v237
    %240 = vrot.lane.b32.xlu0 %v22, 1
    %v241 = vpop.permute.xlu0 %240
    %v243 = vsel %vm31, 0.0, %v241
    %v244 = vsel %vm33, %v243, 0.0
    %v246 = vrot.slane %v244, 4
    %247 = vrot.lane.b32.xlu0 %v246, 127
    %v248 = vpop.permute.xlu0 %247
    %250 = vrot.lane.b32.xlu0 %v244, 126
    %v251 = vpop.permute.xlu0 %250
    %v252 = vsel %vm42, %v244, %v248
    %v253 = vsel %vm42, %v251, 0
    %255 = vmatprep.subr.mxu0 0.0
    %256 = vmatpush1.msra.mxu0 %v252
    %257 = vmatprep.subr.mxu0 0.0
    %258 = vmatpush1.msra.mxu0 %v253
    %259 = vmatprep.subr.mxu0 0.0
    %260 = vmatpush1.msra.mxu0 0.0
    %261 = vmatprep.subr.mxu0 0.0
    %262 = vmatpush1.msra.mxu0 0.0
    %263 = vmatprep.subr.mxu0 0.0
    %264 = vmatpush1.msra.mxu0 0.0
    %265 = vmatprep.subr.mxu0 0.0
    %266 = vmatpush1.msra.mxu0 0.0
    %267 = vmatprep.subr.mxu0 0.0
    %268 = vmatpush1.msra.mxu0 0.0
    %269 = vmatprep.subr.mxu0 0.0
    %270 = vmatpush1.msra.mxu0 0.0
    %271 = vmatprep.subr.mxu0 0.0
    %272 = vmatpush1.msra.mxu0 0.0
    %273 = vmatprep.subr.mxu0 0.0
    %274 = vmatpush1.msra.mxu0 0.0
    %275 = vmatprep.subr.mxu0 0.0
    %276 = vmatpush1.msra.mxu0 0.0
    %277 = vmatprep.subr.mxu0 0.0
    %278 = vmatpush1.msra.mxu0 0.0
    %279 = vmatprep.subr.mxu0 0.0
    %280 = vmatpush1.msra.mxu0 0.0
    %281 = vmatprep.subr.mxu0 0.0
    %282 = vmatpush1.msra.mxu0 0.0
    %283 = vmatprep.subr.mxu0 0.0
    %284 = vmatpush1.msra.mxu0 0.0
    %285 = vmatprep.subr.mxu0 0.0
    %286 = vmatpush1.msra.mxu0 0.0
    %287 = vmatprep.subr.mxu0 0.0
    %288 = vmatpush1.msra.mxu0 0.0
    %289 = vmatprep.subr.mxu0 0.0
    %290 = vmatpush1.msra.mxu0 0.0
    %291 = vmatprep.subr.mxu0 0.0
    %292 = vmatpush1.msra.mxu0 0.0
    %293 = vmatprep.subr.mxu0 0.0
    %294 = vmatpush1.msra.mxu0 0.0
    %295 = vmatprep.subr.mxu0 0.0
    %296 = vmatpush1.msra.mxu0 0.0
    %297 = vmatprep.subr.mxu0 0.0
    %298 = vmatpush1.msra.mxu0 0.0
    %299 = vmatprep.subr.mxu0 0.0
    %300 = vmatpush1.msra.mxu0 0.0
    %301 = vmatprep.subr.mxu0 0.0
    %302 = vmatpush1.msra.mxu0 0.0
    %303 = vmatprep.subr.mxu0 0.0
    %304 = vmatpush1.msra.mxu0 0.0
    %305 = vmatprep.subr.mxu0 0.0
    %306 = vmatpush1.msra.mxu0 0.0
    %307 = vmatprep.subr.mxu0 0.0
    %308 = vmatpush1.msra.mxu0 0.0
    %309 = vmatprep.subr.mxu0 0.0
    %310 = vmatpush1.msra.mxu0 0.0
    %311 = vmatprep.subr.mxu0 0.0
    %312 = vmatpush1.msra.mxu0 0.0
    %313 = vmatprep.subr.mxu0 0.0
    %314 = vmatpush1.msra.mxu0 0.0
    %315 = vmatprep.subr.mxu0 0.0
    %316 = vmatpush1.msra.mxu0 0.0
    %317 = vmatprep.subr.mxu0 0.0
    %318 = vmatpush1.msra.mxu0 0.0
    %319 = vmatprep.mubr.f32.mxu0 0.0
    %320 = vmatmul.mubr.f32.gmra.mrb[0].mxu0 %v51
    %v321 = vpop.f32.mrb[0].mxu0
    %v322 = vadd.f32 %v47, %v321
    %v323 = vpop.f32.mrb[0].mxu0
    %324 = vdwg.mxu0
    %326 = vrot.lane.b32.xlu0 %v322, 2
    %v327 = vpop.permute.xlu0 %326
    %v329 = vsel %vm129, 0.0, %v327
    %v330 = vsel %vm131, %v329, 0.0
    %332 = vrot.lane.b32.xlu0 %v330, 127
    %v333 = vpop.permute.xlu0 %332
    %335 = vrot.lane.b32.xlu0 %v330, 126
    %v336 = vpop.permute.xlu0 %335
    %338 = vrot.lane.b32.xlu0 %v330, 125
    %v339 = vpop.permute.xlu0 %338
    %341 = vrot.lane.b32.xlu0 %v330, 124
    %v342 = vpop.permute.xlu0 %341
    %344 = vmatprep.subr.mxu0 0.0
    %345 = vmatpush1.msra.mxu0 %v330
    %346 = vmatprep.subr.mxu0 0.0
    %347 = vmatpush1.msra.mxu0 %v333
    %348 = vmatprep.subr.mxu0 0.0
    %349 = vmatpush1.msra.mxu0 %v336
    %350 = vmatprep.subr.mxu0 0.0
    %351 = vmatpush1.msra.mxu0 %v339
    %352 = vmatprep.subr.mxu0 0.0
    %353 = vmatpush1.msra.mxu0 %v342
    %354 = vmatprep.subr.mxu0 0.0
    %355 = vmatpush1.msra.mxu0 0.0
    %356 = vmatprep.subr.mxu0 0.0
    %357 = vmatpush1.msra.mxu0 0.0
    %358 = vmatprep.subr.mxu0 0.0
    %359 = vmatpush1.msra.mxu0 0.0
    %360 = vmatprep.subr.mxu0 0.0
    %361 = vmatpush1.msra.mxu0 0.0
    %362 = vmatprep.subr.mxu0 0.0
    %363 = vmatpush1.msra.mxu0 0.0
    %364 = vmatprep.subr.mxu0 0.0
    %365 = vmatpush1.msra.mxu0 0.0
    %366 = vmatprep.subr.mxu0 0.0
    %367 = vmatpush1.msra.mxu0 0.0
    %368 = vmatprep.subr.mxu0 0.0
    %369 = vmatpush1.msra.mxu0 0.0
    %370 = vmatprep.subr.mxu0 0.0
    %371 = vmatpush1.msra.mxu0 0.0
    %372 = vmatprep.subr.mxu0 0.0
    %373 = vmatpush1.msra.mxu0 0.0
    %374 = vmatprep.subr.mxu0 0.0
    %375 = vmatpush1.msra.mxu0 0.0
    %376 = vmatprep.subr.mxu0 0.0
    %377 = vmatpush1.msra.mxu0 0.0
    %378 = vmatprep.subr.mxu0 0.0
    %379 = vmatpush1.msra.mxu0 0.0
    %380 = vmatprep.subr.mxu0 0.0
    %381 = vmatpush1.msra.mxu0 0.0
    %382 = vmatprep.subr.mxu0 0.0
    %383 = vmatpush1.msra.mxu0 0.0
    %384 = vmatprep.subr.mxu0 0.0
    %385 = vmatpush1.msra.mxu0 0.0
    %386 = vmatprep.subr.mxu0 0.0
    %387 = vmatpush1.msra.mxu0 0.0
    %388 = vmatprep.subr.mxu0 0.0
    %389 = vmatpush1.msra.mxu0 0.0
    %390 = vmatprep.subr.mxu0 0.0
    %391 = vmatpush1.msra.mxu0 0.0
    %392 = vmatprep.subr.mxu0 0.0
    %393 = vmatpush1.msra.mxu0 0.0
    %394 = vmatprep.subr.mxu0 0.0
    %395 = vmatpush1.msra.mxu0 0.0
    %396 = vmatprep.subr.mxu0 0.0
    %397 = vmatpush1.msra.mxu0 0.0
    %398 = vmatprep.subr.mxu0 0.0
    %399 = vmatpush1.msra.mxu0 0.0
    %400 = vmatprep.subr.mxu0 0.0
    %401 = vmatpush1.msra.mxu0 0.0
    %402 = vmatprep.subr.mxu0 0.0
    %403 = vmatpush1.msra.mxu0 0.0
    %404 = vmatprep.subr.mxu0 0.0
    %405 = vmatpush1.msra.mxu0 0.0
    %406 = vmatprep.subr.mxu0 0.0
    %407 = vmatpush1.msra.mxu0 0.0
    %408 = vmatprep.mubr.f32.mxu0 0.0
    %409 = vmatmul.mubr.f32.gmra.mrb[0].mxu0 %v153
    %v410 = vpop.f32.mrb[0].mxu0
    %v411 = vadd.f32 %v149, %v410
    %v412 = vpop.f32.mrb[0].mxu0
    %413 = vdwg.mxu0
    %v414 = vsel %vm225, %v411, -inf
    %v415 = vrot.slane %v414, 4
    %v416 = vmax.f32 %v414, %v415
    %v417 = vrot.slane %v416, 2
    %v418 = vmax.f32 %v416, %v417
    %v419 = vrot.slane %v418, 1
    %v420 = vmax.f32 %v418, %v419
    %v421 = vxor.u32 %v420, 2147483648
    %v422 = vmul.f32 %v421, 1.442695
    %v423 = vpow.pop %v422
    %v424 = vadd.f32 %v423, 1.0
    %v425 = vrcp.pop %v424
    %v426 = vmul.f32 1.0, %v425
    %vm427 = vcmask 1040384
    %v428 = vsel %vm427, %v238, %v426
    %vm429 = vcmask 123904
    %430 = vst.msk [vmem:[#allocation2] sm:$0x3] %vm429, %v428
    // Predicated region
    $region22: #{tpu_custom_call.1} parent=1 // pred_check
      _
    $region23: #{tpu_custom_call.1} parent=1 // pred_check_branch
      %432 = sbr.rel (0) target = $region25
    $region24: #{tpu_custom_call.1} parent=1 // pred_region
      %s434 = ssub.s32 32, 32
      %435 = vsyncadd [#allocation3], %s434
      %s437 = sshll.u32 [#allocation2], 4
      %s438 = int_to_ptr.vmem [resolvable:$true] %s437
      %440 = dma.vmem_to_hbm [thread:$0]  %s438, 32, %s5, [#allocation3]
    $region25: #{tpu_custom_call.1} parent=1 // pred_fallthru
      _
    // Predicated region
    $region26: #{tpu_custom_call.1} parent=1 // pred_check
      _
    $region27: #{tpu_custom_call.1} parent=1 // pred_check_branch
      %442 = sbr.rel (0) target = $region29
    $region28: #{tpu_custom_call.1} parent=1 // pred_region
      %443 = dma.done [#allocation3], 32
    $region29: #{tpu_custom_call.1} parent=1 // pred_fallthru
      _
    %444 = vsyncpa [#allocation3], 1

</llo_original>
